<compile_context>
chip_gen: v6e
topology: v6e:2x2x1
jax: 0.10.0
libtpu: 0.0.40
codegen_flags: <defaults>
</compile_context>

<pallas_src>
import functools

import jax
import jax.numpy as jnp
from jax.experimental import pallas as pl
from jax.experimental.pallas import tpu as pltpu


def _round_up(n, m):
    return ((n + m - 1) // m) * m


def _vmem_capacity_bytes():
    """Per-TensorCore VMEM capacity; conservative 64 MiB fallback (v7x)."""
    try:
        return int(pltpu.get_tpu_info().vmem_capacity_bytes)
    except Exception:
        return 64 * 1024 * 1024


def _supports_bf16_elementwise():
    """v6e/v7x have bf16 VPU/EUP; v5e and earlier do not."""
    try:
        kind = jax.devices()[0].device_kind.lower()
    except Exception:
        return False
    return not any(v in kind for v in ("v2", "v3", "v4", "v5"))


def _attention_kernel(x_ref, w1t_ref, w2t_ref, ws1_ref, ws2_ref, o_ref, *,
                      c_actual, tail_dtype):
    x = x_ref[...]                                                       # (TB, C)

    # ---- channel attention (AdaptiveAvgPool2d(1) is identity for 1x1 spatial).
    # Matmuls run bf16 x bf16 on the MXU with f32 accumulation (single pass,
    # half the weight VMEM / vreg traffic vs f32 operands).
    h = jnp.dot(x.astype(jnp.bfloat16), w1t_ref[...],
                preferred_element_type=jnp.float32)                      # (TB, Crp)
    h = jnp.maximum(h, 0.0)                                              # ReLU
    # TODO(synk): Dropout(ATTENTION_DROPOUT) treated as eval-mode identity.
    ca = jnp.dot(h.astype(jnp.bfloat16), w2t_ref[...],
                 preferred_element_type=jnp.float32)                     # (TB, C)
    ca = jax.nn.sigmoid(ca)

    # ---- elementwise tail (bf16 on v6e/v7x with bf16 I/O, else f32).
    x_t = x.astype(tail_dtype)
    x_ca = x_t * ca.astype(tail_dtype)                                   # (TB, C)

    # ---- spatial attention on the 1x1 "spatial" map (center taps of 7x7 convs).
    # Block is exactly C lanes wide (no channel padding), so no masking needed
    # and the mean divides by the true channel count.
    avg = jnp.sum(x_ca.astype(jnp.float32), axis=1, keepdims=True) * (1.0 / c_actual)
    mx = jnp.max(x_ca, axis=1, keepdims=True).astype(jnp.float32)        # (TB, 1)
    s1 = jnp.maximum(avg * ws1_ref[0:1, :] + mx * ws1_ref[1:2, :], 0.0)  # (TB, Sp)
    # N=1 matmul would waste the MXU and give a lane-sparse result; use a VPU
    # multiply + lane reduce instead (padded Sp columns are zero).
    sa = jax.nn.sigmoid(jnp.sum(s1 * ws2_ref[...], axis=-1, keepdims=True))

    o_ref[...] = (x_ca * sa.astype(tail_dtype)).astype(o_ref.dtype)      # (TB, C)


def _spectral_normalize(w):
    """W / sigma_max(W reshaped to (out, -1)) — matches nn.utils.spectral_norm."""
    w2d = w.reshape(w.shape[0], -1)
    sigma = jnp.linalg.svd(w2d, compute_uv=False)[0]
    return w / sigma


def prepare_attention_params(params, *, matmul_dtype=jnp.bfloat16):
    """One-time weight preprocessing (spectral norm + center tap + transpose + pad).

    Hoisted out of the per-call path: SVDs / reshapes only run when the weights
    change.  Channel matmul weights are stored in bf16 (MXU-native); the tiny
    spatial weights stay f32 for the VPU path.
    """
    w1 = _spectral_normalize(params["w1"])[:, :, 0, 0]       # (Cr, C)
    w2 = _spectral_normalize(params["w2"])[:, :, 0, 0]       # (C, Cr)
    ws1 = _spectral_normalize(params["ws1"])[:, :, 3, 3]     # (16, 2) center tap
    ws2 = _spectral_normalize(params["ws2"])[:, :, 3, 3]     # (1, 16) center tap

    Cr, C = w1.shape
    S = ws1.shape[0]
    Crp = _round_up(Cr, 128)        # MXU-friendly bottleneck width (zero pad, free)
    Sp = _round_up(S, 128)          # lane-dense spatial intermediate

    w1t = jnp.zeros((C, Crp), jnp.float32).at[:, :Cr].set(w1.T.astype(jnp.float32))
    w2t = jnp.zeros((Crp, C), jnp.float32).at[:Cr, :].set(w2.T.astype(jnp.float32))
    ws1p = jnp.zeros((2, Sp), jnp.float32).at[:, :S].set(ws1.T.astype(jnp.float32))
    ws2p = jnp.zeros((1, Sp), jnp.float32).at[:, :S].set(ws2.astype(jnp.float32))

    return {
        "w1t": w1t.astype(matmul_dtype),
        "w2t": w2t.astype(matmul_dtype),
        "ws1": ws1p,
        "ws2": ws2p,
        "C": C,
    }


def enhanced_attention_forward(x, prep, *, block_rows=4096, io_dtype=None):
    """x: (B, C). prep: output of prepare_attention_params. Returns (B, C).

    For large, mem-bound batches on v6e/v7x pass x (and io_dtype) as bfloat16 to
    halve the streamed HBM bytes; math stays f32-accumulated inside.
    """
    B, C = x.shape
    assert C == prep["C"], "channel mismatch with prepared weights"
    io_dtype = jnp.dtype(io_dtype) if io_dtype is not None else x.dtype
    if x.dtype != io_dtype:
        x = x.astype(io_dtype)

    Crp = prep["w1t"].shape[1]
    Sp = prep["ws1"].shape[1]
    io_bytes = io_dtype.itemsize
    # bf16 native sublane tile is (16, 128) -> round batch tiles to 16 (32 for 8-bit).
    align = 16 if io_bytes == 2 else (32 if io_bytes == 1 else 8)

    # bf16 elementwise tail only when streaming bf16 on a chip with bf16 VPU/EUP.
    tail_dtype = (jnp.bfloat16
                  if (io_dtype == jnp.bfloat16 and _supports_bf16_elementwise())
                  else jnp.float32)

    # ---- generation-aware VMEM budget (v7x: 64 MiB/TC; v5e/v6e: 128 MiB).
    vmem_cap = _vmem_capacity_bytes()
    usable = min(max(vmem_cap - (8 << 20), 24 << 20), 100 << 20)

    Cl = _round_up(C, 128)                                    # lane footprint of temps
    w_itemsize = prep["w1t"].dtype.itemsize
    weight_bytes = 2 * C * Crp * w_itemsize + 3 * Sp * 4
    fixed = 2 * weight_bytes + (2 << 20)                      # buffered weights + slack
    per_row = 2 * 2 * C * io_bytes + 8 * Cl * 4               # dbl-buffered I/O + f32 temps
    tb_cap = max(align, ((usable - fixed) // per_row) // align * align)

    if B <= align:
        TB = B                                                # full-extent block, no masking
    else:
        TB = min(tb_cap, _round_up(min(block_rows, B), align))
        if TB >= B and B >= 128:
            # >=2 grid steps so ("parallel",) can shard across v7x TensorCores.
            TB = max(align, _round_up((B + 1) // 2, align))

    grid = (pl.cdiv(B, TB),)

    kernel = functools.partial(_attention_kernel, c_actual=C, tail_dtype=tail_dtype)

    # No host-side padding: ragged batch edge handled by Pallas boundary masking
    # (rows are independent, so garbage in the padded rows never contaminates
    # valid rows and the out-of-bounds stores are dropped).
    out = pl.pallas_call(
        kernel,
        out_shape=jax.ShapeDtypeStruct((B, C), io_dtype),
        grid=grid,
        in_specs=[
            pl.BlockSpec((TB, C), lambda i: (i, 0)),          # x tile (pipelined)
            pl.BlockSpec((C, Crp), lambda i: (0, 0)),         # weights stay resident
            pl.BlockSpec((Crp, C), lambda i: (0, 0)),
            pl.BlockSpec((2, Sp), lambda i: (0, 0)),
            pl.BlockSpec((1, Sp), lambda i: (0, 0)),
        ],
        out_specs=pl.BlockSpec((TB, C), lambda i: (i, 0)),
        compiler_params=pltpu.CompilerParams(
            dimension_semantics=("parallel",),
            vmem_limit_bytes=int(usable),
        ),
    )(x, prep["w1t"], prep["w2t"], prep["ws1"], prep["ws2"])

    return out


def _reference_forward(x, params):
    """Pure-JAX f32 reference of the same math (for correctness check)."""
    w1 = _spectral_normalize(params["w1"])[:, :, 0, 0]
    w2 = _spectral_normalize(params["w2"])[:, :, 0, 0]
    ws1 = _spectral_normalize(params["ws1"])[:, :, 3, 3]
    ws2 = _spectral_normalize(params["ws2"])[:, :, 3, 3]
    h = jnp.maximum(x @ w1.T, 0.0)
    ca = jax.nn.sigmoid(h @ w2.T)
    x_ca = x * ca
    avg = jnp.mean(x_ca, axis=1, keepdims=True)
    mx = jnp.max(x_ca, axis=1, keepdims=True)
    sp = jnp.concatenate([avg, mx], axis=1)
    s1 = jnp.maximum(sp @ ws1.T, 0.0)
    sa = jax.nn.sigmoid(s1 @ ws2.T)
    return x_ca * sa


if __name__ == "__main__":
    B, C, reduction = 8, 64, 16
    Cr = C // reduction

    key = jax.random.PRNGKey(0)
    kx, kb, k1, k2, k3, k4 = jax.random.split(key, 6)

    x = jax.random.normal(kx, (B, C), dtype=jnp.float32)
    params = {
        # channel attention: Conv2d(C, C//r, 1, bias=False), Conv2d(C//r, C, 1, bias=False)
        "w1": jax.random.normal(k1, (Cr, C, 1, 1), dtype=jnp.float32) * 0.1,
        "w2": jax.random.normal(k2, (C, Cr, 1, 1), dtype=jnp.float32) * 0.1,
        # spatial attention: Conv2d(2, 16, 7, pad=3, bias=False), Conv2d(16, 1, 7, pad=3, bias=False)
        "ws1": jax.random.normal(k3, (16, 2, 7, 7), dtype=jnp.float32) * 0.1,
        "ws2": jax.random.normal(k4, (1, 16, 7, 7), dtype=jnp.float32) * 0.1,
    }

    # One-time setup (spectral-norm SVDs, transposes, bf16 weight cast) hoisted here.
    prep = prepare_attention_params(params)
    ref = _reference_forward(x, params)

    # Tolerances are bf16-matmul level: the kernel intentionally runs the channel
    # matmuls with bf16 operands (f32 accumulation), per the perf review.

    # f32 I/O path.
    out = jax.block_until_ready(enhanced_attention_forward(x, prep))
    assert out.shape == (B, C) and out.dtype == x.dtype
    assert jnp.allclose(out, ref, atol=3e-2, rtol=3e-2), "f32 mismatch vs reference"

    # Batch size that doesn't fill the block (exercises the masked boundary block).
    out_odd = jax.block_until_ready(enhanced_attention_forward(x[:5], prep))
    assert out_odd.shape == (5, C)
    assert jnp.allclose(out_odd, ref[:5], atol=3e-2, rtol=3e-2), "ragged-batch mismatch"

    # Larger batch: multi-step grid + ragged last block, no host pad/slice.
    xb = jax.random.normal(kb, (300, C), dtype=jnp.float32)
    ref_big = _reference_forward(xb, params)
    out_big = jax.block_until_ready(enhanced_attention_forward(xb, prep))
    assert out_big.shape == (300, C)
    assert jnp.allclose(out_big, ref_big, atol=3e-2, rtol=3e-2), "multi-tile mismatch"

    # bf16 streaming I/O path (bf16 elementwise tail on v6e/v7x, f32 on v5e).
    out_bf16 = jax.block_until_ready(
        enhanced_attention_forward(x.astype(jnp.bfloat16), prep, io_dtype=jnp.bfloat16)
    ).astype(jnp.float32)
    assert jnp.allclose(out_bf16, ref, atol=5e-2, rtol=5e-2), "bf16 mismatch vs reference"

    print("KERNEL_OK")
</pallas_src>

<mosaic_0001>
module attributes {stable_mosaic.version = 11 : i64} {
  func.func @_attention_kernel(%arg0: i32, %arg1: memref<8x64xf32, #tpu.memory_space<vmem>>, %arg2: memref<64x128xbf16, #tpu.memory_space<vmem>>, %arg3: memref<128x64xbf16, #tpu.memory_space<vmem>>, %arg4: memref<2x128xf32, #tpu.memory_space<vmem>>, %arg5: memref<1x128xf32, #tpu.memory_space<vmem>>, %arg6: memref<8x64xf32, #tpu.memory_space<vmem>>) attributes {dimension_semantics = [#tpu.dimension_semantics<parallel>], iteration_bounds = array<i64: 1>, scalar_prefetch = 0 : i64, scratch_operands = 0 : i64, tpu.core_type = #tpu.core_type<tc>, window_params = [{transform_indices = @transform_0, window_bounds = array<i64: 8, 64>}, {pipeline_mode = #tpu.pipeline_mode<synchronous>, transform_indices = @transform_1, window_bounds = array<i64: 64, 128>}, {pipeline_mode = #tpu.pipeline_mode<synchronous>, transform_indices = @transform_2, window_bounds = array<i64: 128, 64>}, {pipeline_mode = #tpu.pipeline_mode<synchronous>, transform_indices = @transform_3, window_bounds = array<i64: 2, 128>}, {pipeline_mode = #tpu.pipeline_mode<synchronous>, transform_indices = @transform_4, window_bounds = array<i64: 1, 128>}, {transform_indices = @transform_5, window_bounds = array<i64: 8, 64>}]} {
    %c0 = arith.constant 0 : index
    %c0_0 = arith.constant 0 : index
    %0 = vector.load %arg1[%c0, %c0_0] : memref<8x64xf32, #tpu.memory_space<vmem>>, vector<8x64xf32>
    %1 = arith.truncf %0 : vector<8x64xf32> to vector<8x64xbf16>
    %c0_1 = arith.constant 0 : index
    %c0_2 = arith.constant 0 : index
    %2 = vector.load %arg2[%c0_1, %c0_2] : memref<64x128xbf16, #tpu.memory_space<vmem>>, vector<64x128xbf16>
    %cst = arith.constant dense<0.000000e+00> : vector<8x128xf32>
    %3 = tpu.matmul %1, %2, %cst {dimension_numbers = #tpu.dot_dimension_numbers<[1], [0], [0], [1], [0, 0, 1, 1], [], []>} : vector<8x64xbf16>, vector<64x128xbf16>, vector<8x128xf32> -> vector<8x128xf32>
    %cst_3 = arith.constant 0.000000e+00 : f32
    %4 = vector.broadcast %cst_3 : f32 to vector<8x128xf32>
    %5 = arith.maximumf %3, %4 : vector<8x128xf32>
    %6 = arith.truncf %5 : vector<8x128xf32> to vector<8x128xbf16>
    %c0_4 = arith.constant 0 : index
    %c0_5 = arith.constant 0 : index
    %7 = vector.load %arg3[%c0_4, %c0_5] : memref<128x64xbf16, #tpu.memory_space<vmem>>, vector<128x64xbf16>
    %cst_6 = arith.constant dense<0.000000e+00> : vector<8x64xf32>
    %8 = tpu.matmul %6, %7, %cst_6 {dimension_numbers = #tpu.dot_dimension_numbers<[1], [0], [0], [1], [0, 0, 1, 1], [], []>} : vector<8x128xbf16>, vector<128x64xbf16>, vector<8x64xf32> -> vector<8x64xf32>
    %9 = arith.negf %8 : vector<8x64xf32>
    %10 = math.exp %9 : vector<8x64xf32>
    %cst_7 = arith.constant 1.000000e+00 : f32
    %11 = vector.broadcast %cst_7 : f32 to vector<8x64xf32>
    %12 = arith.addf %11, %10 : vector<8x64xf32>
    %13 = arith.divf %11, %12 : vector<8x64xf32>
    %14 = arith.mulf %0, %13 : vector<8x64xf32>
    %cst_8 = arith.constant dense<0.000000e+00> : vector<8xf32>
    %15 = vector.multi_reduction <add>, %14, %cst_8 [1] : vector<8x64xf32> to vector<8xf32>
    %16 = vector.shape_cast %15 : vector<8xf32> to vector<8x1xf32>
    %cst_9 = arith.constant 1.562500e-02 : f32
    %17 = vector.broadcast %cst_9 : f32 to vector<8x1xf32>
    %18 = arith.mulf %16, %17 : vector<8x1xf32>
    %cst_10 = arith.constant dense<0xFF800000> : vector<8xf32>
    %19 = vector.multi_reduction <maximumf>, %14, %cst_10 [1] : vector<8x64xf32> to vector<8xf32>
    %20 = vector.shape_cast %19 : vector<8xf32> to vector<8x1xf32>
    %c0_11 = arith.constant 0 : index
    %c0_12 = arith.constant 0 : index
    %21 = vector.load %arg4[%c0_11, %c0_12] : memref<2x128xf32, #tpu.memory_space<vmem>>, vector<1x128xf32>
    %22 = vector.broadcast %18 : vector<8x1xf32> to vector<8x128xf32>
    %23 = vector.broadcast %21 : vector<1x128xf32> to vector<8x128xf32>
    %24 = arith.mulf %22, %23 : vector<8x128xf32>
    %c1 = arith.constant 1 : index
    %c0_13 = arith.constant 0 : index
    %25 = vector.load %arg4[%c1, %c0_13] : memref<2x128xf32, #tpu.memory_space<vmem>>, vector<1x128xf32>
    %26 = vector.broadcast %20 : vector<8x1xf32> to vector<8x128xf32>
    %27 = vector.broadcast %25 : vector<1x128xf32> to vector<8x128xf32>
    %28 = arith.mulf %26, %27 : vector<8x128xf32>
    %29 = arith.addf %24, %28 : vector<8x128xf32>
    %cst_14 = arith.constant 0.000000e+00 : f32
    %30 = vector.broadcast %cst_14 : f32 to vector<8x128xf32>
    %31 = arith.maximumf %29, %30 : vector<8x128xf32>
    %c0_15 = arith.constant 0 : index
    %c0_16 = arith.constant 0 : index
    %32 = vector.load %arg5[%c0_15, %c0_16] : memref<1x128xf32, #tpu.memory_space<vmem>>, vector<1x128xf32>
    %33 = vector.broadcast %32 : vector<1x128xf32> to vector<8x128xf32>
    %34 = arith.mulf %31, %33 : vector<8x128xf32>
    %cst_17 = arith.constant dense<0.000000e+00> : vector<8xf32>
    %35 = vector.multi_reduction <add>, %34, %cst_17 [1] : vector<8x128xf32> to vector<8xf32>
    %36 = vector.shape_cast %35 : vector<8xf32> to vector<8x1xf32>
    %37 = arith.negf %36 : vector<8x1xf32>
    %38 = math.exp %37 : vector<8x1xf32>
    %cst_18 = arith.constant 1.000000e+00 : f32
    %39 = vector.broadcast %cst_18 : f32 to vector<8x1xf32>
    %40 = arith.addf %39, %38 : vector<8x1xf32>
    %41 = arith.divf %39, %40 : vector<8x1xf32>
    %42 = vector.broadcast %41 : vector<8x1xf32> to vector<8x64xf32>
    %43 = arith.mulf %14, %42 : vector<8x64xf32>
    %c0_19 = arith.constant 0 : index
    %c0_20 = arith.constant 0 : index
    %44 = vector.load %arg6[%c0_19, %c0_20] : memref<8x64xf32, #tpu.memory_space<vmem>>, vector<8x64xf32>
    tpu.vector_store %arg6[%c0_19, %c0_20], %43 {strides = array<i32>} : memref<8x64xf32, #tpu.memory_space<vmem>>, vector<8x64xf32>,
    return
  }
  func.func @transform_0(%arg0: i32) -> (i32, i32) {
    %c0_i32 = arith.constant 0 : i32
    %c0_i32_0 = arith.constant 0 : i32
    return %arg0, %c0_i32 : i32, i32
  }
  func.func @transform_1(%arg0: i32) -> (i32, i32) {
    %c0_i32 = arith.constant 0 : i32
    %c0_i32_0 = arith.constant 0 : i32
    %c0_i32_1 = arith.constant 0 : i32
    return %c0_i32, %c0_i32_0 : i32, i32
  }
  func.func @transform_2(%arg0: i32) -> (i32, i32) {
    %c0_i32 = arith.constant 0 : i32
    %c0_i32_0 = arith.constant 0 : i32
    %c0_i32_1 = arith.constant 0 : i32
    return %c0_i32, %c0_i32_0 : i32, i32
  }
  func.func @transform_3(%arg0: i32) -> (i32, i32) {
    %c0_i32 = arith.constant 0 : i32
    %c0_i32_0 = arith.constant 0 : i32
    %c0_i32_1 = arith.constant 0 : i32
    return %c0_i32, %c0_i32_0 : i32, i32
  }
  func.func @transform_4(%arg0: i32) -> (i32, i32) {
    %c0_i32 = arith.constant 0 : i32
    %c0_i32_0 = arith.constant 0 : i32
    %c0_i32_1 = arith.constant 0 : i32
    return %c0_i32, %c0_i32_0 : i32, i32
  }
  func.func @transform_5(%arg0: i32) -> (i32, i32) {
    %c0_i32 = arith.constant 0 : i32
    %c0_i32_0 = arith.constant 0 : i32
    return %arg0, %c0_i32 : i32, i32
  }
}

</mosaic_0001>

<llo_original>
// kernel: tpu_custom_call.1
$region0: #{tpu_custom_call.1}
  #allocation0 [shape = 'u32[]', space=smem, size = 0x4, offset = 0x4, fixed_abs, tag = 'smem constant byte address 0x4 - core index']
  #allocation1 [shape = 'u32[144,128]{1,0:T(1,128)}', space=vmem, size = 0x12000, scoped, tag = 'internal scratch']
  %s0 = inlined_call_operand.vmem [shape: f32[8,64], index: 0, kind: input, shape index: {}]
  %s1 = inlined_call_operand.vmem [shape: bf16[64,128], index: 1, kind: input, shape index: {}]
  %s2 = inlined_call_operand.vmem [shape: bf16[128,64], index: 2, kind: input, shape index: {}]
  %s3 = inlined_call_operand.vmem [shape: f32[2,128], index: 3, kind: input, shape index: {}]
  %s4 = inlined_call_operand.vmem [shape: f32[1,128], index: 4, kind: input, shape index: {}]
  %s5 = inlined_call_operand.hbm [shape: f32[8,64], index: 5, kind: output, shape index: {}]
  %s6 = sld [smem:[#allocation0]]
  $region30: #{tpu_custom_call.1} parent=0
    _
  %s8 = ssub.s32 1, %s6
  %s9 = scalar_select 0, %s8, %s6
  $region1: #{tpu_custom_call.1} parent=0
    #allocation2 [shape = 'u8[4096]{0}', space=vmem, size = 0x1000, scoped, tag = 'output window, operand 0, single buffered']
    #allocation3 [shape = 's32[1]{0}', space=sflag, size = 0x4, scoped, tag = 'scoped memory for tpu_custom_call.1']
    %10 = vsyncpa [#allocation3], 0
    // Predicated region
    $region2: #{tpu_custom_call.1} parent=1 // pred_check
      _
    $region3: #{tpu_custom_call.1} parent=1 // pred_check_branch
      %12 = sbr.rel (0) target = $region5
    $region4: #{tpu_custom_call.1} parent=1 // pred_region
      _
    $region5: #{tpu_custom_call.1} parent=1 // pred_fallthru
      _
    // Predicated region
    $region6: #{tpu_custom_call.1} parent=1 // pred_check
      _
    $region7: #{tpu_custom_call.1} parent=1 // pred_check_branch
      %14 = sbr.rel (0) target = $region9
    $region8: #{tpu_custom_call.1} parent=1 // pred_region
      _
    $region9: #{tpu_custom_call.1} parent=1 // pred_fallthru
      _
    // Predicated region
    $region10: #{tpu_custom_call.1} parent=1 // pred_check
      _
    $region11: #{tpu_custom_call.1} parent=1 // pred_check_branch
      %16 = sbr.rel (0) target = $region13
    $region12: #{tpu_custom_call.1} parent=1 // pred_region
      _
    $region13: #{tpu_custom_call.1} parent=1 // pred_fallthru
      _
    // Predicated region
    $region14: #{tpu_custom_call.1} parent=1 // pred_check
      _
    $region15: #{tpu_custom_call.1} parent=1 // pred_check_branch
      %18 = sbr.rel (0) target = $region17
    $region16: #{tpu_custom_call.1} parent=1 // pred_region
      _
    $region17: #{tpu_custom_call.1} parent=1 // pred_fallthru
      _
    // Predicated region
    $region18: #{tpu_custom_call.1} parent=1 // pred_check
      _
    $region19: #{tpu_custom_call.1} parent=1 // pred_check_branch
      %20 = sbr.rel (0) target = $region21
    $region20: #{tpu_custom_call.1} parent=1 // pred_region
      _
    $region21: #{tpu_custom_call.1} parent=1 // pred_fallthru
      _
    %v22 = vld [vmem:[%s0] sm:$0xff]
    %v23 = vpack.c.bf16 %v22, %v22
    %v24 = vld [vmem:[%s1] sm:$0xf]
    %v25 = vld [vmem:[%s1 + $0x4] sm:$0xf]
    %v26 = vld [vmem:[%s1 + $0x8] sm:$0xf]
    %v27 = vld [vmem:[%s1 + $0xc] sm:$0xf]
    %v28 = vld [vmem:[%s1 + $0x10] sm:$0xf]
    %v29 = vld [vmem:[%s1 + $0x14] sm:$0xf]
    %v30 = vld [vmem:[%s1 + $0x18] sm:$0xf]
    %v31 = vld [vmem:[%s1 + $0x1c] sm:$0xf]
    %v40 = vunpack.c.l.b16 %v24
    %v41 = vunpack.c.l.b16 %v25
    %v42 = vunpack.c.l.b16 %v26
    %v43 = vunpack.c.l.b16 %v27
    %v44 = vunpack.c.l.b16 %v28
    %v45 = vunpack.c.l.b16 %v29
    %v46 = vunpack.c.l.b16 %v30
    %v47 = vunpack.c.l.b16 %v31
    %v48 = vpack.c.b16 %v41, %v40
    %v49 = vpack.c.b16 %v43, %v42
    %v50 = vpack.c.b16 %v45, %v44
    %v51 = vpack.c.b16 %v47, %v46
    %vm56 = vcmask 523264
    %v58 = vsel %vm56, %v23, 0
    %60 = vmatprep.subr.bf16.mxu0 0
    %61 = vmatpush1.bf16.msra.mxu0 0
    %62 = vmatprep.subr.bf16.mxu0 0
    %63 = vmatpush1.bf16.msra.mxu0 0
    %64 = vmatprep.subr.bf16.mxu0 0
    %65 = vmatpush1.bf16.msra.mxu0 0
    %66 = vmatprep.subr.bf16.mxu0 0
    %67 = vmatpush1.bf16.msra.mxu0 0
    %68 = vmatprep.subr.bf16.mxu0 0
    %69 = vmatpush1.bf16.msra.mxu0 %v51
    %70 = vmatprep.subr.bf16.mxu0 0
    %71 = vmatpush1.bf16.msra.mxu0 %v50
    %72 = vmatprep.subr.bf16.mxu0 0
    %73 = vmatpush1.bf16.msra.mxu0 %v49
    %74 = vmatprep.subr.bf16.mxu0 0
    %75 = vmatpush1.bf16.msra.mxu0 %v48
    %76 = vmatprep.subr.bf16.mxu0 0
    %77 = vmatpush2.bf16.msra.mxu0 0
    %78 = vmatprep.subr.bf16.mxu0 0
    %79 = vmatpush2.bf16.msra.mxu0 0
    %80 = vmatprep.subr.bf16.mxu0 0
    %81 = vmatpush2.bf16.msra.mxu0 0
    %82 = vmatprep.subr.bf16.mxu0 0
    %83 = vmatpush2.bf16.msra.mxu0 0
    %84 = vmatprep.subr.bf16.mxu0 0
    %85 = vmatpush2.bf16.msra.mxu0 0
    %86 = vmatprep.subr.bf16.mxu0 0
    %87 = vmatpush2.bf16.msra.mxu0 0
    %88 = vmatprep.subr.bf16.mxu0 0
    %89 = vmatpush2.bf16.msra.mxu0 0
    %90 = vmatprep.subr.bf16.mxu0 0
    %91 = vmatpush2.bf16.msra.mxu0 0
    %92 = vmatprep.mubr.bf16.mxu0 0
    %93 = vmatmul.mubr.bf16.gmra.mxu0 %v58
    %v94 = vpop.f32.mrf.mxu0
    %v95 = vadd.f32 0.0, %v94
    %v96 = vpop.f32.mrf.mxu0
    %v97 = vpop.f32.mrf.mxu0
    %v98 = vpop.f32.mrf.mxu0
    %99 = vdwg.mxu0
    %v100 = vmax.f32 %v95, 0.0
    %v101 = vpack.c.bf16 %v100, %v100
    %v102 = vld [vmem:[%s2] sm:$0xf]
    %v103 = vld [vmem:[%s2 + $0x4] sm:$0xf]
    %v104 = vld [vmem:[%s2 + $0x8] sm:$0xf]
    %v105 = vld [vmem:[%s2 + $0xc] sm:$0xf]
    %v106 = vld [vmem:[%s2 + $0x10] sm:$0xf]
    %v107 = vld [vmem:[%s2 + $0x14] sm:$0xf]
    %v108 = vld [vmem:[%s2 + $0x18] sm:$0xf]
    %v109 = vld [vmem:[%s2 + $0x1c] sm:$0xf]
    %v110 = vld [vmem:[%s2 + $0x20] sm:$0xf]
    %v111 = vld [vmem:[%s2 + $0x24] sm:$0xf]
    %v112 = vld [vmem:[%s2 + $0x28] sm:$0xf]
    %v113 = vld [vmem:[%s2 + $0x2c] sm:$0xf]
    %v114 = vld [vmem:[%s2 + $0x30] sm:$0xf]
    %v115 = vld [vmem:[%s2 + $0x34] sm:$0xf]
    %v116 = vld [vmem:[%s2 + $0x38] sm:$0xf]
    %v117 = vld [vmem:[%s2 + $0x3c] sm:$0xf]
    %v134 = vunpack.c.l.b16 %v102
    %v135 = vunpack.c.l.b16 %v103
    %v136 = vunpack.c.l.b16 %v104
    %v137 = vunpack.c.l.b16 %v105
    %v138 = vunpack.c.l.b16 %v106
    %v139 = vunpack.c.l.b16 %v107
    %v140 = vunpack.c.l.b16 %v108
    %v141 = vunpack.c.l.b16 %v109
    %v142 = vunpack.c.l.b16 %v110
    %v143 = vunpack.c.l.b16 %v111
    %v144 = vunpack.c.l.b16 %v112
    %v145 = vunpack.c.l.b16 %v113
    %v146 = vunpack.c.l.b16 %v114
    %v147 = vunpack.c.l.b16 %v115
    %v148 = vunpack.c.l.b16 %v116
    %v149 = vunpack.c.l.b16 %v117
    %v150 = vpack.c.b16 %v135, %v134
    %v151 = vpack.c.b16 %v137, %v136
    %v152 = vpack.c.b16 %v139, %v138
    %v153 = vpack.c.b16 %v141, %v140
    %v154 = vpack.c.b16 %v143, %v142
    %v155 = vpack.c.b16 %v145, %v144
    %v156 = vpack.c.b16 %v147, %v146
    %v157 = vpack.c.b16 %v149, %v148
    %166 = vmatprep.subr.bf16.mxu0 0
    %167 = vmatpush1.bf16.msra.mxu0 %v157
    %168 = vmatprep.subr.bf16.mxu0 0
    %169 = vmatpush1.bf16.msra.mxu0 %v156
    %170 = vmatprep.subr.bf16.mxu0 0
    %171 = vmatpush1.bf16.msra.mxu0 %v155
    %172 = vmatprep.subr.bf16.mxu0 0
    %173 = vmatpush1.bf16.msra.mxu0 %v154
    %174 = vmatprep.subr.bf16.mxu0 0
    %175 = vmatpush1.bf16.msra.mxu0 %v153
    %176 = vmatprep.subr.bf16.mxu0 0
    %177 = vmatpush1.bf16.msra.mxu0 %v152
    %178 = vmatprep.subr.bf16.mxu0 0
    %179 = vmatpush1.bf16.msra.mxu0 %v151
    %180 = vmatprep.subr.bf16.mxu0 0
    %181 = vmatpush1.bf16.msra.mxu0 %v150
    %182 = vmatprep.subr.bf16.mxu0 0
    %183 = vmatpush2.bf16.msra.mxu0 0
    %184 = vmatprep.subr.bf16.mxu0 0
    %185 = vmatpush2.bf16.msra.mxu0 0
    %186 = vmatprep.subr.bf16.mxu0 0
    %187 = vmatpush2.bf16.msra.mxu0 0
    %188 = vmatprep.subr.bf16.mxu0 0
    %189 = vmatpush2.bf16.msra.mxu0 0
    %190 = vmatprep.subr.bf16.mxu0 0
    %191 = vmatpush2.bf16.msra.mxu0 0
    %192 = vmatprep.subr.bf16.mxu0 0
    %193 = vmatpush2.bf16.msra.mxu0 0
    %194 = vmatprep.subr.bf16.mxu0 0
    %195 = vmatpush2.bf16.msra.mxu0 0
    %196 = vmatprep.subr.bf16.mxu0 0
    %197 = vmatpush2.bf16.msra.mxu0 0
    %198 = vmatprep.mubr.bf16.mxu0 0
    %199 = vmatmul.mubr.bf16.gmra.mxu0 %v101
    %v200 = vpop.f32.mrf.mxu0
    %v201 = vadd.f32 0.0, %v200
    %v202 = vpop.f32.mrf.mxu0
    %v203 = vpop.f32.mrf.mxu0
    %v204 = vpop.f32.mrf.mxu0
    %205 = vdwg.mxu0
    %v206 = vxor.u32 %v201, 2147483648
    %v207 = vmul.f32 %v206, 1.442695
    %v208 = vpow.pop %v207
    %v209 = vadd.f32 %v208, 1.0
    %v210 = vrcp.pop %v209
    %v211 = vmul.f32 1.0, %v210
    %v212 = vmul.f32 %v22, %v211
    %v213 = vsel %vm56, %v212, 0.0
    %214 = vadd.xlane.f32.xlu0 %v213
    %v215 = vpop.xlane.xlu0 %214
    %v216 = vmul.f32 %v215, 0.015625
    %v217 = vsel %vm56, %v212, -inf
    %218 = vmax.xlane.f32.xlu0 %v217
    %v219 = vpop.xlane.xlu0 %218
    %v220 = vld [vmem:[%s3] sm:$0x1]
    %v221 = vlaneseq
    %v222 = vshrl.u32 %v221, 7
    %v223 = vsub.s32 0, %v222
    %v224 = vrot.slane %v220, %v223
    %v225 = vmul.f32 %v216, %v224
    %v226 = vld [vmem:[%s3 + $0x1] sm:$0x1]
    %v227 = vlaneseq
    %v228 = vshrl.u32 %v227, 7
    %v229 = vsub.s32 0, %v228
    %v230 = vrot.slane %v226, %v229
    %v231 = vmul.f32 %v219, %v230
    %v232 = vadd.f32 %v225, %v231
    %v233 = vmax.f32 %v232, 0.0
    %v234 = vld [vmem:[%s4] sm:$0x1]
    %v236 = vlaneseq
    %v237 = vshrl.u32 %v236, 7
    %v238 = vsub.s32 0, %v237
    %v239 = vrot.slane %v234, %v238
    %v241 = vmul.f32 %v233, %v239
    %242 = vadd.xlane.f32.xlu0 %v241
    %v243 = vpop.xlane.xlu0 %242
    %v244 = vxor.u32 %v243, 2147483648
    %v245 = vmul.f32 %v244, 1.442695
    %v246 = vpow.pop %v245
    %v247 = vadd.f32 %v246, 1.0
    %v248 = vrcp.pop %v247
    %v249 = vmul.f32 1.0, %v248
    %v250 = vmul.f32 %v212, %v249
    %251 = vst.msk [vmem:[#allocation2] sm:$0xff] %vm56, %v250
    // Predicated region
    $region22: #{tpu_custom_call.1} parent=1 // pred_check
      _
    $region23: #{tpu_custom_call.1} parent=1 // pred_check_branch
      %253 = sbr.rel (0) target = $region25
    $region24: #{tpu_custom_call.1} parent=1 // pred_region
      %s255 = ssub.s32 128, 128
      %256 = vsyncadd [#allocation3], %s255
      %s258 = sshll.u32 [#allocation2], 4
      %s259 = int_to_ptr.vmem [resolvable:$true] %s258
      %261 = dma.vmem_to_hbm [thread:$0]  %s259, 128, %s5, [#allocation3]
    $region25: #{tpu_custom_call.1} parent=1 // pred_fallthru
      _
    // Predicated region
    $region26: #{tpu_custom_call.1} parent=1 // pred_check
      _
    $region27: #{tpu_custom_call.1} parent=1 // pred_check_branch
      %263 = sbr.rel (0) target = $region29
    $region28: #{tpu_custom_call.1} parent=1 // pred_region
      %264 = dma.done [#allocation3], 128
    $region29: #{tpu_custom_call.1} parent=1 // pred_fallthru
      _
    %265 = vsyncpa [#allocation3], 1

</llo_original>
